<compile_context>
chip_gen: v7x
topology: tpu7x:2x2x1
jax: 0.10.0
libtpu: 0.0.40
codegen_flags: <defaults>
</compile_context>

<pallas_src>
import functools

import jax
import jax.numpy as jnp
from jax.experimental import pallas as pl
from jax.experimental.pallas import tpu as pltpu


def _round_up(x, m):
    return ((x + m - 1) // m) * m


def _pair_contrastive_kernel(eps_ref, xp_ref, w_ref, bias_ref, latn_ref,
                             close_ref, far_ref, *, tile_rows, total_rows):
    i = pl.program_id(0)

    x = xp_ref[...]        # (TM, K)      row tile of patches
    w = w_ref[...]         # (K, hidden)
    bias = bias_ref[...]   # (1, hidden)
    lat_n = latn_ref[...]  # (L, hidden)  rows pre-normalized in the wrapper

    # --- patch embedding (Conv2d with stride == kernel_size) --- MXU
    p = jnp.dot(x, w, preferred_element_type=jnp.float32) + bias   # (TM, hidden)

    # --- cosine similarity, transposed so rows (TM) are on lanes ---
    dots_t = jax.lax.dot_general(
        lat_n, p, (((1,), (1,)), ((), ())),
        preferred_element_type=jnp.float32)                        # (L, TM)

    # Squared patch norms as a lane-dense row (1, TM) via an MXU contraction
    # (no transpose, no XLU reduction in the hot loop).
    ones_h = jnp.ones((1, p.shape[-1]), jnp.float32)
    p_sq = jax.lax.dot_general(
        ones_h, p * p, (((1,), (1,)), ((), ())),
        preferred_element_type=jnp.float32)                        # (1, TM)

    # 1 / max(||p||, 1e-8) on the (otherwise idle) EUP; latent already unit.
    inv_p = jax.lax.rsqrt(jnp.maximum(p_sq, 1e-16))                # (1, TM)
    sim = dots_t * inv_p                                           # (L, TM)

    eps = eps_ref[0]
    e = jnp.exp(sim * 2.0)                                         # sim / 0.5

    # Mask rows that only exist because of padding to a tile multiple.
    row = i * tile_rows + jax.lax.broadcasted_iota(jnp.int32, sim.shape, 1)
    valid = row < total_rows

    e_close = jnp.where((sim >= eps) & valid, e, 0.0)
    e_far = jnp.where((sim < -eps) & valid, e, 0.0)

    # Reduce over the latent axis with an MXU contraction against ones; the
    # lane (row) reduction is deferred to the wrapper, so each step only does
    # one unmasked lane-dense store per output (no scalar RMW accumulation).
    ones_l = jnp.ones((1, lat_n.shape[0]), jnp.float32)
    c_part = jax.lax.dot_general(
        ones_l, e_close, (((1,), (0,)), ((), ())),
        preferred_element_type=jnp.float32)                        # (1, TM)
    f_part = jax.lax.dot_general(
        ones_l, e_far, (((1,), (0,)), ((), ())),
        preferred_element_type=jnp.float32)                        # (1, TM)

    close_ref[...] = c_part.reshape(close_ref.shape)
    far_ref[...] = f_part.reshape(far_ref.shape)


def pair_contrastive_loss(x, eps, conv_w, conv_b, latent, *, size):
    """x: (B, C, H, W) float32 (NCHW, like the PyTorch module)."""
    B, C, H, W = x.shape
    s = size
    nh, nw = H // s, W // s
    N = nh * nw
    K = C * s * s
    hidden = conv_w.shape[0]
    L = latent.shape[-2]

    # Extract non-overlapping patches as (B*N, K), K flattened as (C, kh, kw)
    # in row-major (nh, nw) patch order -- exactly Conv2d's layout.
    xp = x.reshape(B, C, nh, s, nw, s)
    xp = xp.transpose(0, 2, 4, 1, 3, 5).reshape(B * N, K).astype(jnp.float32)

    total_rows = B * N
    if total_rows <= 256:
        tile_rows = _round_up(total_rows, 8)   # single fat grid step
    else:
        tile_rows = 256                        # (128 is also fine on v5e)
    rows_pad = _round_up(total_rows, tile_rows)
    num_tiles = rows_pad // tile_rows
    if rows_pad != total_rows:
        xp = jnp.pad(xp, ((0, rows_pad - total_rows), (0, 0)))

    w_flat = conv_w.reshape(hidden, K).T.astype(jnp.float32)   # (K, hidden)
    bias = conv_b.reshape(1, hidden).astype(jnp.float32)       # (1, hidden)
    lat = latent.reshape(L, hidden).astype(jnp.float32)        # (L, hidden)

    # Hoist the grid-invariant latent normalization out of the kernel
    # (per-vector clamp at 1e-8, matching PyTorch CosineSimilarity semantics).
    lat_norm = jnp.sqrt(jnp.sum(lat * lat, axis=-1, keepdims=True))
    lat_n = lat / jnp.maximum(lat_norm, 1e-8)

    eps_arr = jnp.asarray([eps], jnp.float32)

    kernel = functools.partial(_pair_contrastive_kernel,
                               tile_rows=tile_rows, total_rows=total_rows)

    # NOTE: w_flat / bias / lat_n are grid-invariant; at large K*hidden they
    # could be pinned to a single pipeline buffer to free VMEM for bigger row
    # tiles (most relevant on v7x's 64 MiB VMEM).
    close_parts, far_parts = pl.pallas_call(
        kernel,
        out_shape=(jax.ShapeDtypeStruct((num_tiles, 1, tile_rows), jnp.float32),
                   jax.ShapeDtypeStruct((num_tiles, 1, tile_rows), jnp.float32)),
        grid=(num_tiles,),
        in_specs=[
            pl.BlockSpec(memory_space=pltpu.MemorySpace.SMEM),     # eps scalar
            pl.BlockSpec((tile_rows, K), lambda i: (i, 0)),        # patch rows
            pl.BlockSpec((K, hidden), lambda i: (0, 0)),           # conv weight
            pl.BlockSpec((1, hidden), lambda i: (0, 0)),           # conv bias
            pl.BlockSpec((L, hidden), lambda i: (0, 0)),           # norm. latent
        ],
        out_specs=(pl.BlockSpec((1, 1, tile_rows), lambda i: (i, 0, 0)),
                   pl.BlockSpec((1, 1, tile_rows), lambda i: (i, 0, 0))),
        compiler_params=pltpu.CompilerParams(
            dimension_semantics=("parallel",)),
    )(eps_arr, xp, w_flat, bias, lat_n)

    close_sum = jnp.sum(close_parts)
    far_sum = jnp.sum(far_parts)
    # loss = -log(sum(exp(close/0.5)) / sum(exp(far/0.5))); .mean() of a scalar
    # is the scalar itself.  As in the PyTorch reference, an empty close/far
    # set yields a non-finite loss.
    loss = -jnp.log(close_sum / far_sum)
    return loss


if __name__ == "__main__":
    key = jax.random.PRNGKey(0)
    kx, kw, kb, kl = jax.random.split(key, 4)

    # Small shapes consistent with the module: 16x16 image, 4x4 patches
    # -> 16 patches/image, hidden=32, 8 latent vectors.
    B, C, H, W = 2, 4, 16, 16
    size = 4
    hidden = 32
    latent_n = 8

    x = jax.random.normal(kx, (B, C, H, W), jnp.float32)
    conv_w = 0.05 * jax.random.normal(kw, (hidden, C, size, size), jnp.float32)
    conv_b = 0.05 * jax.random.normal(kb, (hidden,), jnp.float32)
    latent = jax.random.normal(kl, (1, latent_n, hidden), jnp.float32)
    eps = 0.1

    loss = pair_contrastive_loss(x, eps, conv_w, conv_b, latent, size=size)
    jax.block_until_ready(loss)
    print("KERNEL_OK")
</pallas_src>

<mosaic_0001>
module attributes {stable_mosaic.version = 11 : i64} {
  func.func @_pair_contrastive_kernel(%arg0: i32, %arg1: memref<1xf32, #tpu.memory_space<smem>>, %arg2: memref<32x64xf32, #tpu.memory_space<vmem>>, %arg3: memref<64x32xf32, #tpu.memory_space<vmem>>, %arg4: memref<1x32xf32, #tpu.memory_space<vmem>>, %arg5: memref<8x32xf32, #tpu.memory_space<vmem>>, %arg6: memref<1x1x32xf32, #tpu.memory_space<vmem>>, %arg7: memref<1x1x32xf32, #tpu.memory_space<vmem>>) attributes {dimension_semantics = [#tpu.dimension_semantics<parallel>], iteration_bounds = array<i64: 1>, scalar_prefetch = 0 : i64, scratch_operands = 0 : i64, tpu.core_type = #tpu.core_type<tc>, window_params = [{transform_indices = @transform_0, window_bounds = array<i64: 1>}, {transform_indices = @transform_1, window_bounds = array<i64: 32, 64>}, {pipeline_mode = #tpu.pipeline_mode<synchronous>, transform_indices = @transform_2, window_bounds = array<i64: 64, 32>}, {pipeline_mode = #tpu.pipeline_mode<synchronous>, transform_indices = @transform_3, window_bounds = array<i64: 1, 32>}, {pipeline_mode = #tpu.pipeline_mode<synchronous>, transform_indices = @transform_4, window_bounds = array<i64: 8, 32>}, {transform_indices = @transform_5, window_bounds = array<i64: 1, 1, 32>}, {transform_indices = @transform_6, window_bounds = array<i64: 1, 1, 32>}]} {
    %c0 = arith.constant 0 : index
    %c0_0 = arith.constant 0 : index
    %0 = vector.load %arg2[%c0, %c0_0] : memref<32x64xf32, #tpu.memory_space<vmem>>, vector<32x64xf32>
    %c0_1 = arith.constant 0 : index
    %c0_2 = arith.constant 0 : index
    %1 = vector.load %arg3[%c0_1, %c0_2] : memref<64x32xf32, #tpu.memory_space<vmem>>, vector<64x32xf32>
    %c0_3 = arith.constant 0 : index
    %c0_4 = arith.constant 0 : index
    %2 = vector.load %arg4[%c0_3, %c0_4] : memref<1x32xf32, #tpu.memory_space<vmem>>, vector<1x32xf32>
    %c0_5 = arith.constant 0 : index
    %c0_6 = arith.constant 0 : index
    %3 = vector.load %arg5[%c0_5, %c0_6] : memref<8x32xf32, #tpu.memory_space<vmem>>, vector<8x32xf32>
    %cst = arith.constant dense<0.000000e+00> : vector<32x32xf32>
    %4 = tpu.matmul %0, %1, %cst {dimension_numbers = #tpu.dot_dimension_numbers<[1], [0], [0], [1], [0, 0, 1, 1], [], []>} : vector<32x64xf32>, vector<64x32xf32>, vector<32x32xf32> -> vector<32x32xf32>
    %5 = vector.broadcast %2 : vector<1x32xf32> to vector<32x32xf32>
    %6 = arith.addf %4, %5 : vector<32x32xf32>
    %cst_7 = arith.constant dense<0.000000e+00> : vector<8x32xf32>
    %7 = tpu.matmul %3, %6, %cst_7 {dimension_numbers = #tpu.dot_dimension_numbers<[1], [1], [0], [0], [0, 0, 1, 0], [], []>} : vector<8x32xf32>, vector<32x32xf32>, vector<8x32xf32> -> vector<8x32xf32>
    %cst_8 = arith.constant 1.000000e+00 : f32
    %8 = vector.broadcast %cst_8 : f32 to vector<1x32xf32>
    %9 = arith.mulf %6, %6 : vector<32x32xf32>
    %cst_9 = arith.constant dense<0.000000e+00> : vector<1x32xf32>
    %10 = tpu.matmul %8, %9, %cst_9 {dimension_numbers = #tpu.dot_dimension_numbers<[1], [1], [0], [0], [0, 0, 1, 0], [], []>} : vector<1x32xf32>, vector<32x32xf32>, vector<1x32xf32> -> vector<1x32xf32>
    %cst_10 = arith.constant 1.000000e-16 : f32
    %11 = vector.broadcast %cst_10 : f32 to vector<1x32xf32>
    %12 = arith.maximumf %10, %11 : vector<1x32xf32>
    %13 = math.rsqrt %12 : vector<1x32xf32>
    %14 = vector.broadcast %13 : vector<1x32xf32> to vector<8x32xf32>
    %15 = arith.mulf %7, %14 : vector<8x32xf32>
    %c0_11 = arith.constant 0 : index
    %16 = memref.load %arg1[%c0_11] : memref<1xf32, #tpu.memory_space<smem>>
    %cst_12 = arith.constant 2.000000e+00 : f32
    %17 = vector.broadcast %cst_12 : f32 to vector<8x32xf32>
    %18 = arith.mulf %15, %17 : vector<8x32xf32>
    %19 = math.exp %18 : vector<8x32xf32>
    %c32_i32 = arith.constant 32 : i32
    %20 = arith.muli %arg0, %c32_i32 : i32
    %21 = tpu.iota {dimensions = array<i32: 1>} : vector<8x32xi32>
    %22 = vector.broadcast %20 : i32 to vector<8x32xi32>
    %23 = arith.addi %22, %21 : vector<8x32xi32>
    %c32_i32_13 = arith.constant 32 : i32
    %24 = vector.broadcast %c32_i32_13 : i32 to vector<8x32xi32>
    %25 = arith.cmpi slt, %23, %24 : vector<8x32xi32>
    %26 = vector.broadcast %16 : f32 to vector<8x32xf32>
    %27 = arith.cmpf oge, %15, %26 : vector<8x32xf32>
    %28 = arith.andi %27, %25 : vector<8x32xi1>
    %cst_14 = arith.constant 0.000000e+00 : f32
    %29 = vector.broadcast %cst_14 : f32 to vector<8x32xf32>
    %30 = arith.select %28, %19, %29 : vector<8x32xi1>, vector<8x32xf32>
    %cst_15 = arith.constant 0.000000e+00 : f32
    %31 = arith.subf %cst_15, %16 : f32
    %32 = vector.broadcast %31 : f32 to vector<8x32xf32>
    %33 = arith.cmpf olt, %15, %32 : vector<8x32xf32>
    %34 = arith.andi %33, %25 : vector<8x32xi1>
    %cst_16 = arith.constant 0.000000e+00 : f32
    %35 = vector.broadcast %cst_16 : f32 to vector<8x32xf32>
    %36 = arith.select %34, %19, %35 : vector<8x32xi1>, vector<8x32xf32>
    %cst_17 = arith.constant 1.000000e+00 : f32
    %37 = vector.broadcast %cst_17 : f32 to vector<1x8xf32>
    %cst_18 = arith.constant dense<0.000000e+00> : vector<1x32xf32>
    %38 = tpu.matmul %37, %30, %cst_18 {dimension_numbers = #tpu.dot_dimension_numbers<[1], [0], [0], [1], [0, 0, 1, 1], [], []>} : vector<1x8xf32>, vector<8x32xf32>, vector<1x32xf32> -> vector<1x32xf32>
    %cst_19 = arith.constant dense<0.000000e+00> : vector<1x32xf32>
    %39 = tpu.matmul %37, %36, %cst_19 {dimension_numbers = #tpu.dot_dimension_numbers<[1], [0], [0], [1], [0, 0, 1, 1], [], []>} : vector<1x8xf32>, vector<8x32xf32>, vector<1x32xf32> -> vector<1x32xf32>
    %40 = vector.shape_cast %38 : vector<1x32xf32> to vector<1x1x32xf32>
    %c0_20 = arith.constant 0 : index
    %c0_21 = arith.constant 0 : index
    %c0_22 = arith.constant 0 : index
    %41 = vector.load %arg6[%c0_20, %c0_21, %c0_22] : memref<1x1x32xf32, #tpu.memory_space<vmem>>, vector<1x1x32xf32>
    tpu.vector_store %arg6[%c0_20, %c0_21, %c0_22], %40 {strides = array<i32>} : memref<1x1x32xf32, #tpu.memory_space<vmem>>, vector<1x1x32xf32>,
    %42 = vector.shape_cast %39 : vector<1x32xf32> to vector<1x1x32xf32>
    %c0_23 = arith.constant 0 : index
    %c0_24 = arith.constant 0 : index
    %c0_25 = arith.constant 0 : index
    %43 = vector.load %arg7[%c0_23, %c0_24, %c0_25] : memref<1x1x32xf32, #tpu.memory_space<vmem>>, vector<1x1x32xf32>
    tpu.vector_store %arg7[%c0_23, %c0_24, %c0_25], %42 {strides = array<i32>} : memref<1x1x32xf32, #tpu.memory_space<vmem>>, vector<1x1x32xf32>,
    return
  }
  func.func @transform_0(%arg0: i32) -> i32 {
    %c0_i32 = arith.constant 0 : i32
    %c0_i32_0 = arith.constant 0 : i32
    return %c0_i32 : i32
  }
  func.func @transform_1(%arg0: i32) -> (i32, i32) {
    %c0_i32 = arith.constant 0 : i32
    %c0_i32_0 = arith.constant 0 : i32
    return %arg0, %c0_i32 : i32, i32
  }
  func.func @transform_2(%arg0: i32) -> (i32, i32) {
    %c0_i32 = arith.constant 0 : i32
    %c0_i32_0 = arith.constant 0 : i32
    %c0_i32_1 = arith.constant 0 : i32
    return %c0_i32, %c0_i32_0 : i32, i32
  }
  func.func @transform_3(%arg0: i32) -> (i32, i32) {
    %c0_i32 = arith.constant 0 : i32
    %c0_i32_0 = arith.constant 0 : i32
    %c0_i32_1 = arith.constant 0 : i32
    return %c0_i32, %c0_i32_0 : i32, i32
  }
  func.func @transform_4(%arg0: i32) -> (i32, i32) {
    %c0_i32 = arith.constant 0 : i32
    %c0_i32_0 = arith.constant 0 : i32
    %c0_i32_1 = arith.constant 0 : i32
    return %c0_i32, %c0_i32_0 : i32, i32
  }
  func.func @transform_5(%arg0: i32) -> (i32, i32, i32) {
    %c0_i32 = arith.constant 0 : i32
    %c0_i32_0 = arith.constant 0 : i32
    %c0_i32_1 = arith.constant 0 : i32
    return %arg0, %c0_i32, %c0_i32_0 : i32, i32, i32
  }
  func.func @transform_6(%arg0: i32) -> (i32, i32, i32) {
    %c0_i32 = arith.constant 0 : i32
    %c0_i32_0 = arith.constant 0 : i32
    %c0_i32_1 = arith.constant 0 : i32
    return %arg0, %c0_i32, %c0_i32_0 : i32, i32, i32
  }
}

</mosaic_0001>

<llo_original>
// kernel: tpu_custom_call.1
$region0: #{tpu_custom_call.1}
  #allocation0 [shape = 'u32[]', space=smem, size = 0x4, offset = 0x4, fixed_abs, tag = 'smem constant byte address 0x4 - core index']
  #allocation1 [shape = 'u32[144,128]{1,0:T(1,128)}', space=vmem, size = 0x12000, scoped, tag = 'internal scratch']
  #allocation2 [shape = 'f32[1]{0:T(128)S(6)}', space=smem, size = 0x200, scoped, tag = 'scoped memory for tpu_custom_call.1']
  %s0 = inlined_call_operand.<no memory space> [shape: f32[1], index: 0, kind: input, shape index: {}]
  %s1 = inlined_call_operand.vmem [shape: f32[32,64], index: 1, kind: input, shape index: {}]
  %s2 = inlined_call_operand.vmem [shape: f32[64,32], index: 2, kind: input, shape index: {}]
  %s3 = inlined_call_operand.vmem [shape: f32[1,32], index: 3, kind: input, shape index: {}]
  %s4 = inlined_call_operand.vmem [shape: f32[8,32], index: 4, kind: input, shape index: {}]
  %s5 = inlined_call_operand.hbm [shape: f32[1,1,32], index: 5, kind: output, shape index: {0}]
  %s6 = inlined_call_operand.hbm [shape: f32[1,1,32], index: 6, kind: output, shape index: {1}]
  %7 = xla_tuple %s5, %s6
  %s8 = sld [smem:[#allocation0]]
  $region38: #{tpu_custom_call.1} parent=0
    _
  %s10 = ssub.s32 1, %s8
  %s11 = scalar_select 0, %s10, %s8
  %12 = sst [smem:[#allocation2]] %s0
  $region1: #{tpu_custom_call.1} parent=0
    #allocation3 [shape = 'u8[512]{0}', space=vmem, size = 0x400, scoped, tag = 'output window, operand 0, single buffered']
    #allocation4 [shape = 's32[1]{0}', space=sflag, size = 0x4, scoped, tag = 'scoped memory for tpu_custom_call.1']
    #allocation5 [shape = 'u8[512]{0}', space=vmem, size = 0x400, scoped, tag = 'output window, operand 1, single buffered']
    #allocation6 [shape = 's32[1]{0}', space=sflag, size = 0x4, scoped, tag = 'scoped memory for tpu_custom_call.1']
    %13 = vsyncpa [#allocation4], 0
    %14 = vsyncpa [#allocation6], 0
    // Predicated region
    $region2: #{tpu_custom_call.1} parent=1 // pred_check
      _
    $region3: #{tpu_custom_call.1} parent=1 // pred_check_branch
      %16 = sbr.rel (0) target = $region5
    $region4: #{tpu_custom_call.1} parent=1 // pred_region
      _
    $region5: #{tpu_custom_call.1} parent=1 // pred_fallthru
      _
    // Predicated region
    $region6: #{tpu_custom_call.1} parent=1 // pred_check
      _
    $region7: #{tpu_custom_call.1} parent=1 // pred_check_branch
      %18 = sbr.rel (0) target = $region9
    $region8: #{tpu_custom_call.1} parent=1 // pred_region
      _
    $region9: #{tpu_custom_call.1} parent=1 // pred_fallthru
      _
    // Predicated region
    $region10: #{tpu_custom_call.1} parent=1 // pred_check
      _
    $region11: #{tpu_custom_call.1} parent=1 // pred_check_branch
      %20 = sbr.rel (0) target = $region13
    $region12: #{tpu_custom_call.1} parent=1 // pred_region
      _
    $region13: #{tpu_custom_call.1} parent=1 // pred_fallthru
      _
    // Predicated region
    $region14: #{tpu_custom_call.1} parent=1 // pred_check
      _
    $region15: #{tpu_custom_call.1} parent=1 // pred_check_branch
      %22 = sbr.rel (0) target = $region17
    $region16: #{tpu_custom_call.1} parent=1 // pred_region
      _
    $region17: #{tpu_custom_call.1} parent=1 // pred_fallthru
      _
    // Predicated region
    $region18: #{tpu_custom_call.1} parent=1 // pred_check
      _
    $region19: #{tpu_custom_call.1} parent=1 // pred_check_branch
      %24 = sbr.rel (0) target = $region21
    $region20: #{tpu_custom_call.1} parent=1 // pred_region
      _
    $region21: #{tpu_custom_call.1} parent=1 // pred_fallthru
      _
    %v25 = vld [vmem:[%s1] sm:$0xff]
    %v26 = vld [vmem:[%s1 + $0x8] sm:$0xff]
    %v27 = vld [vmem:[%s1 + $0x10] sm:$0xff]
    %v28 = vld [vmem:[%s1 + $0x18] sm:$0xff]
    %v29 = vld [vmem:[%s2] sm:$0xff]
    %v30 = vld [vmem:[%s2 + $0x8] sm:$0xff]
    %v31 = vld [vmem:[%s2 + $0x10] sm:$0xff]
    %v32 = vld [vmem:[%s2 + $0x18] sm:$0xff]
    %v33 = vld [vmem:[%s2 + $0x20] sm:$0xff]
    %v34 = vld [vmem:[%s2 + $0x28] sm:$0xff]
    %v35 = vld [vmem:[%s2 + $0x30] sm:$0xff]
    %v36 = vld [vmem:[%s2 + $0x38] sm:$0xff]
    %v37 = vld [vmem:[%s3] sm:$0x1]
    %v38 = vld [vmem:[%s4] sm:$0xff]
    %v40 = vlaneseq
    %v41 = vshrl.u32 %v40, 7
    %v42 = vsub.s32 0, %v41
    %v43 = vrot.slane %v37, %v42
    %vm45 = vcmask 523264
    %v47 = vsel %vm45, %v25, 0
    %v50 = vsel %vm45, %v26, 0
    %v53 = vsel %vm45, %v27, 0
    %v56 = vsel %vm45, %v28, 0
    %58 = vmatprep.subr.mxu0 0.0
    %59 = vmatpush1.msra.mxu0 %v29
    %60 = vmatprep.subr.mxu0 0.0
    %61 = vmatpush1.msra.mxu0 %v30
    %62 = vmatprep.subr.mxu0 0.0
    %63 = vmatpush1.msra.mxu0 %v31
    %64 = vmatprep.subr.mxu0 0.0
    %65 = vmatpush1.msra.mxu0 %v32
    %66 = vmatprep.subr.mxu0 0.0
    %67 = vmatpush1.msra.mxu0 %v33
    %68 = vmatprep.subr.mxu0 0.0
    %69 = vmatpush1.msra.mxu0 %v34
    %70 = vmatprep.subr.mxu0 0.0
    %71 = vmatpush1.msra.mxu0 %v35
    %72 = vmatprep.subr.mxu0 0.0
    %73 = vmatpush1.msra.mxu0 %v36
    %74 = vmatprep.subr.mxu0 0.0
    %75 = vmatpush1.msra.mxu0 0.0
    %76 = vmatprep.subr.mxu0 0.0
    %77 = vmatpush1.msra.mxu0 0.0
    %78 = vmatprep.subr.mxu0 0.0
    %79 = vmatpush1.msra.mxu0 0.0
    %80 = vmatprep.subr.mxu0 0.0
    %81 = vmatpush1.msra.mxu0 0.0
    %82 = vmatprep.subr.mxu0 0.0
    %83 = vmatpush1.msra.mxu0 0.0
    %84 = vmatprep.subr.mxu0 0.0
    %85 = vmatpush1.msra.mxu0 0.0
    %86 = vmatprep.subr.mxu0 0.0
    %87 = vmatpush1.msra.mxu0 0.0
    %88 = vmatprep.subr.mxu0 0.0
    %89 = vmatpush1.msra.mxu0 0.0
    %90 = vmatprep.subr.mxu0 0.0
    %91 = vmatpush1.msra.mxu0 0.0
    %92 = vmatprep.subr.mxu0 0.0
    %93 = vmatpush1.msra.mxu0 0.0
    %94 = vmatprep.subr.mxu0 0.0
    %95 = vmatpush1.msra.mxu0 0.0
    %96 = vmatprep.subr.mxu0 0.0
    %97 = vmatpush1.msra.mxu0 0.0
    %98 = vmatprep.subr.mxu0 0.0
    %99 = vmatpush1.msra.mxu0 0.0
    %100 = vmatprep.subr.mxu0 0.0
    %101 = vmatpush1.msra.mxu0 0.0
    %102 = vmatprep.subr.mxu0 0.0
    %103 = vmatpush1.msra.mxu0 0.0
    %104 = vmatprep.subr.mxu0 0.0
    %105 = vmatpush1.msra.mxu0 0.0
    %106 = vmatprep.subr.mxu0 0.0
    %107 = vmatpush1.msra.mxu0 0.0
    %108 = vmatprep.subr.mxu0 0.0
    %109 = vmatpush1.msra.mxu0 0.0
    %110 = vmatprep.subr.mxu0 0.0
    %111 = vmatpush1.msra.mxu0 0.0
    %112 = vmatprep.subr.mxu0 0.0
    %113 = vmatpush1.msra.mxu0 0.0
    %114 = vmatprep.subr.mxu0 0.0
    %115 = vmatpush1.msra.mxu0 0.0
    %116 = vmatprep.subr.mxu0 0.0
    %117 = vmatpush1.msra.mxu0 0.0
    %118 = vmatprep.subr.mxu0 0.0
    %119 = vmatpush1.msra.mxu0 0.0
    %120 = vmatprep.subr.mxu0 0.0
    %121 = vmatpush1.msra.mxu0 0.0
    %122 = vmatprep.mubr.f32.mxu0 0.0
    %123 = vmatmul.mubr.f32.gmra.mrb[0].mxu0 %v47
    %v124 = vpop.f32.mrb[0].mxu0
    %v125 = vadd.f32 %v43, %v124
    %v126 = vpop.f32.mrb[0].mxu0
    %127 = vmatprep.mubr.f32.mxu0 0.0
    %128 = vmatmul.mubr.f32.gmra.mrb[0].mxu0 %v50
    %v129 = vpop.f32.mrb[0].mxu0
    %v130 = vadd.f32 %v43, %v129
    %v131 = vpop.f32.mrb[0].mxu0
    %132 = vmatprep.mubr.f32.mxu0 0.0
    %133 = vmatmul.mubr.f32.gmra.mrb[0].mxu0 %v53
    %v134 = vpop.f32.mrb[0].mxu0
    %v135 = vadd.f32 %v43, %v134
    %v136 = vpop.f32.mrb[0].mxu0
    %137 = vmatprep.mubr.f32.mxu0 0.0
    %138 = vmatmul.mubr.f32.gmra.mrb[0].mxu0 %v56
    %v139 = vpop.f32.mrb[0].mxu0
    %v140 = vadd.f32 %v43, %v139
    %v141 = vpop.f32.mrb[0].mxu0
    %142 = vdwg.mxu0
    %vm143 = vcmask 261120
    %v145 = vsel %vm143, %v38, 0
    %v148 = vsel %vm143, %v125, 0
    %v151 = vsel %vm143, %v130, 0
    %v154 = vsel %vm143, %v135, 0
    %v157 = vsel %vm143, %v140, 0
    %159 = vmatprep.subr.mxu0 0.0
    %160 = vmatpush1.xpose.msra.mxu0 %v148
    %161 = vmatprep.subr.mxu0 0.0
    %162 = vmatpush1.xpose.msra.mxu0 %v151
    %163 = vmatprep.subr.mxu0 0.0
    %164 = vmatpush1.xpose.msra.mxu0 %v154
    %165 = vmatprep.subr.mxu0 0.0
    %166 = vmatpush1.xpose.msra.mxu0 %v157
    %167 = vmatprep.subr.mxu0 0.0
    %168 = vmatpush1.xpose.msra.mxu0 0.0
    %169 = vmatprep.subr.mxu0 0.0
    %170 = vmatpush1.xpose.msra.mxu0 0.0
    %171 = vmatprep.subr.mxu0 0.0
    %172 = vmatpush1.xpose.msra.mxu0 0.0
    %173 = vmatprep.subr.mxu0 0.0
    %174 = vmatpush1.xpose.msra.mxu0 0.0
    %175 = vmatprep.subr.mxu0 0.0
    %176 = vmatpush1.xpose.msra.mxu0 0.0
    %177 = vmatprep.subr.mxu0 0.0
    %178 = vmatpush1.xpose.msra.mxu0 0.0
    %179 = vmatprep.subr.mxu0 0.0
    %180 = vmatpush1.xpose.msra.mxu0 0.0
    %181 = vmatprep.subr.mxu0 0.0
    %182 = vmatpush1.xpose.msra.mxu0 0.0
    %183 = vmatprep.subr.mxu0 0.0
    %184 = vmatpush1.xpose.msra.mxu0 0.0
    %185 = vmatprep.subr.mxu0 0.0
    %186 = vmatpush1.xpose.msra.mxu0 0.0
    %187 = vmatprep.subr.mxu0 0.0
    %188 = vmatpush1.xpose.msra.mxu0 0.0
    %189 = vmatprep.subr.mxu0 0.0
    %190 = vmatpush1.xpose.msra.mxu0 0.0
    %191 = vmatprep.subr.mxu0 0.0
    %192 = vmatpush1.xpose.msra.mxu0 0.0
    %193 = vmatprep.subr.mxu0 0.0
    %194 = vmatpush1.xpose.msra.mxu0 0.0
    %195 = vmatprep.subr.mxu0 0.0
    %196 = vmatpush1.xpose.msra.mxu0 0.0
    %197 = vmatprep.subr.mxu0 0.0
    %198 = vmatpush1.xpose.msra.mxu0 0.0
    %199 = vmatprep.subr.mxu0 0.0
    %200 = vmatpush1.xpose.msra.mxu0 0.0
    %201 = vmatprep.subr.mxu0 0.0
    %202 = vmatpush1.xpose.msra.mxu0 0.0
    %203 = vmatprep.subr.mxu0 0.0
    %204 = vmatpush1.xpose.msra.mxu0 0.0
    %205 = vmatprep.subr.mxu0 0.0
    %206 = vmatpush1.xpose.msra.mxu0 0.0
    %207 = vmatprep.subr.mxu0 0.0
    %208 = vmatpush1.xpose.msra.mxu0 0.0
    %209 = vmatprep.subr.mxu0 0.0
    %210 = vmatpush1.xpose.msra.mxu0 0.0
    %211 = vmatprep.subr.mxu0 0.0
    %212 = vmatpush1.xpose.msra.mxu0 0.0
    %213 = vmatprep.subr.mxu0 0.0
    %214 = vmatpush1.xpose.msra.mxu0 0.0
    %215 = vmatprep.subr.mxu0 0.0
    %216 = vmatpush1.xpose.msra.mxu0 0.0
    %217 = vmatprep.subr.mxu0 0.0
    %218 = vmatpush1.xpose.msra.mxu0 0.0
    %219 = vmatprep.subr.mxu0 0.0
    %220 = vmatpush1.xpose.msra.mxu0 0.0
    %221 = vmatprep.subr.mxu0 0.0
    %222 = vmatpush1.xpose.msra.mxu0 0.0
    %223 = vmatprep.mubr.f32.mxu0 0.0
    %224 = vmatmul.mubr.f32.gmra.mrb[0].mxu0 %v145
    %v225 = vpop.f32.mrb[0].mxu0
    %v226 = vadd.f32 0.0, %v225
    %v227 = vpop.f32.mrb[0].mxu0
    %228 = vdwg.mxu0
    %v229 = vmul.f32 %v125, %v125
    %v230 = vmul.f32 %v130, %v130
    %v231 = vmul.f32 %v135, %v135
    %v232 = vmul.f32 %v140, %v140
    %v234 = vsel %vm143, 1.0, 0
    %v237 = vsel %vm143, %v229, 0
    %v240 = vsel %vm143, %v230, 0
    %v243 = vsel %vm143, %v231, 0
    %v246 = vsel %vm143, %v232, 0
    %248 = vmatprep.subr.mxu0 0.0
    %249 = vmatpush1.xpose.msra.mxu0 %v237
    %250 = vmatprep.subr.mxu0 0.0
    %251 = vmatpush1.xpose.msra.mxu0 %v240
    %252 = vmatprep.subr.mxu0 0.0
    %253 = vmatpush1.xpose.msra.mxu0 %v243
    %254 = vmatprep.subr.mxu0 0.0
    %255 = vmatpush1.xpose.msra.mxu0 %v246
    %256 = vmatprep.subr.mxu0 0.0
    %257 = vmatpush1.xpose.msra.mxu0 0.0
    %258 = vmatprep.subr.mxu0 0.0
    %259 = vmatpush1.xpose.msra.mxu0 0.0
    %260 = vmatprep.subr.mxu0 0.0
    %261 = vmatpush1.xpose.msra.mxu0 0.0
    %262 = vmatprep.subr.mxu0 0.0
    %263 = vmatpush1.xpose.msra.mxu0 0.0
    %264 = vmatprep.subr.mxu0 0.0
    %265 = vmatpush1.xpose.msra.mxu0 0.0
    %266 = vmatprep.subr.mxu0 0.0
    %267 = vmatpush1.xpose.msra.mxu0 0.0
    %268 = vmatprep.subr.mxu0 0.0
    %269 = vmatpush1.xpose.msra.mxu0 0.0
    %270 = vmatprep.subr.mxu0 0.0
    %271 = vmatpush1.xpose.msra.mxu0 0.0
    %272 = vmatprep.subr.mxu0 0.0
    %273 = vmatpush1.xpose.msra.mxu0 0.0
    %274 = vmatprep.subr.mxu0 0.0
    %275 = vmatpush1.xpose.msra.mxu0 0.0
    %276 = vmatprep.subr.mxu0 0.0
    %277 = vmatpush1.xpose.msra.mxu0 0.0
    %278 = vmatprep.subr.mxu0 0.0
    %279 = vmatpush1.xpose.msra.mxu0 0.0
    %280 = vmatprep.subr.mxu0 0.0
    %281 = vmatpush1.xpose.msra.mxu0 0.0
    %282 = vmatprep.subr.mxu0 0.0
    %283 = vmatpush1.xpose.msra.mxu0 0.0
    %284 = vmatprep.subr.mxu0 0.0
    %285 = vmatpush1.xpose.msra.mxu0 0.0
    %286 = vmatprep.subr.mxu0 0.0
    %287 = vmatpush1.xpose.msra.mxu0 0.0
    %288 = vmatprep.subr.mxu0 0.0
    %289 = vmatpush1.xpose.msra.mxu0 0.0
    %290 = vmatprep.subr.mxu0 0.0
    %291 = vmatpush1.xpose.msra.mxu0 0.0
    %292 = vmatprep.subr.mxu0 0.0
    %293 = vmatpush1.xpose.msra.mxu0 0.0
    %294 = vmatprep.subr.mxu0 0.0
    %295 = vmatpush1.xpose.msra.mxu0 0.0
    %296 = vmatprep.subr.mxu0 0.0
    %297 = vmatpush1.xpose.msra.mxu0 0.0
    %298 = vmatprep.subr.mxu0 0.0
    %299 = vmatpush1.xpose.msra.mxu0 0.0
    %300 = vmatprep.subr.mxu0 0.0
    %301 = vmatpush1.xpose.msra.mxu0 0.0
    %302 = vmatprep.subr.mxu0 0.0
    %303 = vmatpush1.xpose.msra.mxu0 0.0
    %304 = vmatprep.subr.mxu0 0.0
    %305 = vmatpush1.xpose.msra.mxu0 0.0
    %306 = vmatprep.subr.mxu0 0.0
    %307 = vmatpush1.xpose.msra.mxu0 0.0
    %308 = vmatprep.subr.mxu0 0.0
    %309 = vmatpush1.xpose.msra.mxu0 0.0
    %310 = vmatprep.subr.mxu0 0.0
    %311 = vmatpush1.xpose.msra.mxu0 0.0
    %312 = vmatprep.mubr.f32.mxu0 0.0
    %313 = vmatmul.mubr.f32.gmra.mrb[0].mxu0 %v234
    %v314 = vpop.f32.mrb[0].mxu0
    %v315 = vadd.f32 0.0, %v314
    %v316 = vpop.f32.mrb[0].mxu0
    %317 = vdwg.mxu0
    %v318 = vmax.f32 %v315, 1e-16
    %v319 = vrsqrt.pop %v318
    %v320 = vlaneseq
    %v321 = vshrl.u32 %v320, 7
    %v322 = vsub.s32 0, %v321
    %v323 = vrot.slane %v319, %v322
    %v324 = vmul.f32 %v226, %v323
    %s325 = sld [smem:[#allocation2]]
    %v326 = vmul.f32 %v324, 2.0
    %v327 = vmul.f32 %v326, 1.442695
    %v328 = vpow.pop %v327
    %s329 = smul.u32 0, 32
    %v330 = vlaneseq
    %v331 = vand.u32 %v330, 127
    %v332 = vstv %s329
    %v333 = vadd.s32 %v332, %v331
    %vm334 = vcmp.lt.s32.totalorder %v333, 32
    %v335 = vstv %s325
    %vm336 = vcmp.ge.f32.partialorder %v324, %v335
    %vm337 = vmand %vm336, %vm334
    %v338 = vsel %vm337, %v328, 0.0
    %s339 = ssub.f32 0.0, %s325
    %v340 = vstv %s339
    %vm341 = vcmp.lt.f32.partialorder %v324, %v340
    %vm342 = vmand %vm341, %vm334
    %v343 = vsel %vm342, %v328, 0.0
    %vm344 = vcmask 64512
    %v345 = vsel %vm344, 1.0, 0
    %347 = vmatprep.subr.mxu0 0.0
    %348 = vmatpush1.msra.mxu0 %v338
    %349 = vmatprep.subr.mxu0 0.0
    %350 = vmatpush1.msra.mxu0 0.0
    %351 = vmatprep.subr.mxu0 0.0
    %352 = vmatpush1.msra.mxu0 0.0
    %353 = vmatprep.subr.mxu0 0.0
    %354 = vmatpush1.msra.mxu0 0.0
    %355 = vmatprep.subr.mxu0 0.0
    %356 = vmatpush1.msra.mxu0 0.0
    %357 = vmatprep.subr.mxu0 0.0
    %358 = vmatpush1.msra.mxu0 0.0
    %359 = vmatprep.subr.mxu0 0.0
    %360 = vmatpush1.msra.mxu0 0.0
    %361 = vmatprep.subr.mxu0 0.0
    %362 = vmatpush1.msra.mxu0 0.0
    %363 = vmatprep.subr.mxu0 0.0
    %364 = vmatpush1.msra.mxu0 0.0
    %365 = vmatprep.subr.mxu0 0.0
    %366 = vmatpush1.msra.mxu0 0.0
    %367 = vmatprep.subr.mxu0 0.0
    %368 = vmatpush1.msra.mxu0 0.0
    %369 = vmatprep.subr.mxu0 0.0
    %370 = vmatpush1.msra.mxu0 0.0
    %371 = vmatprep.subr.mxu0 0.0
    %372 = vmatpush1.msra.mxu0 0.0
    %373 = vmatprep.subr.mxu0 0.0
    %374 = vmatpush1.msra.mxu0 0.0
    %375 = vmatprep.subr.mxu0 0.0
    %376 = vmatpush1.msra.mxu0 0.0
    %377 = vmatprep.subr.mxu0 0.0
    %378 = vmatpush1.msra.mxu0 0.0
    %379 = vmatprep.subr.mxu0 0.0
    %380 = vmatpush1.msra.mxu0 0.0
    %381 = vmatprep.subr.mxu0 0.0
    %382 = vmatpush1.msra.mxu0 0.0
    %383 = vmatprep.subr.mxu0 0.0
    %384 = vmatpush1.msra.mxu0 0.0
    %385 = vmatprep.subr.mxu0 0.0
    %386 = vmatpush1.msra.mxu0 0.0
    %387 = vmatprep.subr.mxu0 0.0
    %388 = vmatpush1.msra.mxu0 0.0
    %389 = vmatprep.subr.mxu0 0.0
    %390 = vmatpush1.msra.mxu0 0.0
    %391 = vmatprep.subr.mxu0 0.0
    %392 = vmatpush1.msra.mxu0 0.0
    %393 = vmatprep.subr.mxu0 0.0
    %394 = vmatpush1.msra.mxu0 0.0
    %395 = vmatprep.subr.mxu0 0.0
    %396 = vmatpush1.msra.mxu0 0.0
    %397 = vmatprep.subr.mxu0 0.0
    %398 = vmatpush1.msra.mxu0 0.0
    %399 = vmatprep.subr.mxu0 0.0
    %400 = vmatpush1.msra.mxu0 0.0
    %401 = vmatprep.subr.mxu0 0.0
    %402 = vmatpush1.msra.mxu0 0.0
    %403 = vmatprep.subr.mxu0 0.0
    %404 = vmatpush1.msra.mxu0 0.0
    %405 = vmatprep.subr.mxu0 0.0
    %406 = vmatpush1.msra.mxu0 0.0
    %407 = vmatprep.subr.mxu0 0.0
    %408 = vmatpush1.msra.mxu0 0.0
    %409 = vmatprep.subr.mxu0 0.0
    %410 = vmatpush1.msra.mxu0 0.0
    %411 = vmatprep.mubr.f32.mxu0 0.0
    %412 = vmatmul.mubr.f32.gmra.mrb[0].mxu0 %v345
    %v413 = vpop.f32.mrb[0].mxu0
    %v414 = vadd.f32 0.0, %v413
    %v415 = vpop.f32.mrb[0].mxu0
    %416 = vdwg.mxu0
    %417 = vmatprep.subr.mxu0 0.0
    %418 = vmatpush1.msra.mxu0 %v343
    %419 = vmatprep.subr.mxu0 0.0
    %420 = vmatpush1.msra.mxu0 0.0
    %421 = vmatprep.subr.mxu0 0.0
    %422 = vmatpush1.msra.mxu0 0.0
    %423 = vmatprep.subr.mxu0 0.0
    %424 = vmatpush1.msra.mxu0 0.0
    %425 = vmatprep.subr.mxu0 0.0
    %426 = vmatpush1.msra.mxu0 0.0
    %427 = vmatprep.subr.mxu0 0.0
    %428 = vmatpush1.msra.mxu0 0.0
    %429 = vmatprep.subr.mxu0 0.0
    %430 = vmatpush1.msra.mxu0 0.0
    %431 = vmatprep.subr.mxu0 0.0
    %432 = vmatpush1.msra.mxu0 0.0
    %433 = vmatprep.subr.mxu0 0.0
    %434 = vmatpush1.msra.mxu0 0.0
    %435 = vmatprep.subr.mxu0 0.0
    %436 = vmatpush1.msra.mxu0 0.0
    %437 = vmatprep.subr.mxu0 0.0
    %438 = vmatpush1.msra.mxu0 0.0
    %439 = vmatprep.subr.mxu0 0.0
    %440 = vmatpush1.msra.mxu0 0.0
    %441 = vmatprep.subr.mxu0 0.0
    %442 = vmatpush1.msra.mxu0 0.0
    %443 = vmatprep.subr.mxu0 0.0
    %444 = vmatpush1.msra.mxu0 0.0
    %445 = vmatprep.subr.mxu0 0.0
    %446 = vmatpush1.msra.mxu0 0.0
    %447 = vmatprep.subr.mxu0 0.0
    %448 = vmatpush1.msra.mxu0 0.0
    %449 = vmatprep.subr.mxu0 0.0
    %450 = vmatpush1.msra.mxu0 0.0
    %451 = vmatprep.subr.mxu0 0.0
    %452 = vmatpush1.msra.mxu0 0.0
    %453 = vmatprep.subr.mxu0 0.0
    %454 = vmatpush1.msra.mxu0 0.0
    %455 = vmatprep.subr.mxu0 0.0
    %456 = vmatpush1.msra.mxu0 0.0
    %457 = vmatprep.subr.mxu0 0.0
    %458 = vmatpush1.msra.mxu0 0.0
    %459 = vmatprep.subr.mxu0 0.0
    %460 = vmatpush1.msra.mxu0 0.0
    %461 = vmatprep.subr.mxu0 0.0
    %462 = vmatpush1.msra.mxu0 0.0
    %463 = vmatprep.subr.mxu0 0.0
    %464 = vmatpush1.msra.mxu0 0.0
    %465 = vmatprep.subr.mxu0 0.0
    %466 = vmatpush1.msra.mxu0 0.0
    %467 = vmatprep.subr.mxu0 0.0
    %468 = vmatpush1.msra.mxu0 0.0
    %469 = vmatprep.subr.mxu0 0.0
    %470 = vmatpush1.msra.mxu0 0.0
    %471 = vmatprep.subr.mxu0 0.0
    %472 = vmatpush1.msra.mxu0 0.0
    %473 = vmatprep.subr.mxu0 0.0
    %474 = vmatpush1.msra.mxu0 0.0
    %475 = vmatprep.subr.mxu0 0.0
    %476 = vmatpush1.msra.mxu0 0.0
    %477 = vmatprep.subr.mxu0 0.0
    %478 = vmatpush1.msra.mxu0 0.0
    %479 = vmatprep.subr.mxu0 0.0
    %480 = vmatpush1.msra.mxu0 0.0
    %481 = vmatprep.mubr.f32.mxu0 0.0
    %482 = vmatmul.mubr.f32.gmra.mrb[0].mxu0 %v345
    %v483 = vpop.f32.mrb[0].mxu0
    %v484 = vadd.f32 0.0, %v483
    %v485 = vpop.f32.mrb[0].mxu0
    %486 = vdwg.mxu0
    %vm487 = vcmask 253952
    %488 = vst.msk [vmem:[#allocation3] sm:$0x1] %vm487, %v414
    %489 = vst.msk [vmem:[#allocation5] sm:$0x1] %vm487, %v484
    // Predicated region
    $region22: #{tpu_custom_call.1} parent=1 // pred_check
      _
    $region23: #{tpu_custom_call.1} parent=1 // pred_check_branch
      %491 = sbr.rel (0) target = $region25
    $region24: #{tpu_custom_call.1} parent=1 // pred_region
      %s493 = ssub.s32 16, 16
      %494 = vsyncadd [#allocation4], %s493
      %s496 = sshll.u32 [#allocation3], 4
      %s497 = int_to_ptr.vmem [resolvable:$true] %s496
      %499 = dma.vmem_to_hbm [thread:$0]  %s497, 16, %s5, [#allocation4]
    $region25: #{tpu_custom_call.1} parent=1 // pred_fallthru
      _
    // Predicated region
    $region26: #{tpu_custom_call.1} parent=1 // pred_check
      _
    $region27: #{tpu_custom_call.1} parent=1 // pred_check_branch
      %501 = sbr.rel (0) target = $region29
    $region28: #{tpu_custom_call.1} parent=1 // pred_region
      %s503 = ssub.s32 16, 16
      %504 = vsyncadd [#allocation6], %s503
      %s506 = sshll.u32 [#allocation5], 4
      %s507 = int_to_ptr.vmem [resolvable:$true] %s506
      %509 = dma.vmem_to_hbm [thread:$0]  %s507, 16, %s6, [#allocation6]
    $region29: #{tpu_custom_call.1} parent=1 // pred_fallthru
      _
    // Predicated region
    $region30: #{tpu_custom_call.1} parent=1 // pred_check
      _
    $region31: #{tpu_custom_call.1} parent=1 // pred_check_branch
      %511 = sbr.rel (0) target = $region33
    $region32: #{tpu_custom_call.1} parent=1 // pred_region
      %512 = dma.done [#allocation4], 16
    $region33: #{tpu_custom_call.1} parent=1 // pred_fallthru
      _
    // Predicated region
    $region34: #{tpu_custom_call.1} parent=1 // pred_check
      _
    $region35: #{tpu_custom_call.1} parent=1 // pred_check_branch
      %514 = sbr.rel (0) target = $region37
    $region36: #{tpu_custom_call.1} parent=1 // pred_region
      %515 = dma.done [#allocation6], 16
    $region37: #{tpu_custom_call.1} parent=1 // pred_fallthru
      _
    %516 = vsyncpa [#allocation4], 1
    %517 = vsyncpa [#allocation6], 1

</llo_original>
